<compile_context>
chip_gen: v5e
topology: v5e:2x2
jax: 0.10.0
libtpu: 0.0.40
codegen_flags: <defaults>
</compile_context>

<pallas_src>
import jax
import jax.numpy as jnp
from jax.experimental import pallas as pl
from jax.experimental.pallas import tpu as pltpu


def _relu_kernel(x_ref, o_ref):
    # dtype-matched zero: no implicit f32 promotion, no trailing astype.
    o_ref[...] = jnp.maximum(x_ref[...], jnp.zeros((), x_ref.dtype))


# Keep the simple no-grid path only for genuinely tiny inputs (launch-overhead bound).
_SMALL_LIMIT_BYTES = 512 * 1024
# ~4 MiB blocks amortize the ~0.35 us per-grid-step overhead to a few percent.
_TARGET_BLOCK_BYTES = 4 * 1024 * 1024
# Covers 4 double-buffered 4 MiB blocks with headroom; valid on v5e/v6e/v7x.
_VMEM_LIMIT_BYTES = 32 * 1024 * 1024


def _round_up(v, m):
    return ((v + m - 1) // m) * m


def relu_pallas(x, donate=False):
    """Elementwise ReLU as a Pallas TPU kernel (forward of module M).

    donate=True adds input_output_aliases={0: 0}; only use it when the caller
    can actually donate x (matches the PyTorch module's inplace=True).
    """
    dtype = x.dtype
    itemsize = jnp.dtype(dtype).itemsize
    total = x.size
    nbytes = total * itemsize
    aliases = {0: 0} if donate else {}

    if nbytes <= _SMALL_LIMIT_BYTES:
        # Tiny path: original shape, full-extent block, single invocation.
        return pl.pallas_call(
            _relu_kernel,
            out_shape=jax.ShapeDtypeStruct(x.shape, dtype),
            input_output_aliases=aliases,
        )(x)

    # ---------------- Large-array path: lane-dense slab, pipelined ----------------
    # Widest lane width (multiple of 128) that divides the element count exactly,
    # so the reshape needs no padding and stores are full-width.
    lane = 128
    for cand in (4096, 2048, 1024, 512, 256):
        if total % cand == 0:
            lane = cand
            break

    pad = 0
    if total % lane != 0:
        # Rare fallback (element count not a multiple of 128): pad one partial row.
        pad = lane - (total % lane)
        xs = jnp.pad(x.reshape(-1), (0, pad))
    else:
        xs = x.reshape(-1)

    rows = (total + pad) // lane
    x2d = xs.reshape(rows, lane)

    # ~4 MiB blocks, whole (8,128) vregs per tile.
    tile_rows = max(8, (_TARGET_BLOCK_BYTES // (lane * itemsize)) // 8 * 8)
    if rows >= 16:
        # Keep at least 2 grid steps so v7x's two TensorCores both get work and the
        # pipeline has something to overlap.
        tile_rows = min(tile_rows, max(8, _round_up(pl.cdiv(rows, 2), 8)))
    grid = (pl.cdiv(rows, tile_rows),)  # ragged tail block: OOB writes are masked

    out2d = pl.pallas_call(
        _relu_kernel,
        out_shape=jax.ShapeDtypeStruct((rows, lane), dtype),
        grid_spec=pltpu.PrefetchScalarGridSpec(
            num_scalar_prefetch=0,
            grid=grid,
            in_specs=[pl.BlockSpec((tile_rows, lane), lambda i: (i, 0))],
            out_specs=pl.BlockSpec((tile_rows, lane), lambda i: (i, 0)),
        ),
        compiler_params=pltpu.CompilerParams(
            dimension_semantics=("parallel",),
            vmem_limit_bytes=_VMEM_LIMIT_BYTES,
        ),
        input_output_aliases=aliases,
    )(x2d)

    out = out2d.reshape(-1)
    if pad:
        out = out[:total]
    return out.reshape(x.shape)


if __name__ == "__main__":
    key = jax.random.PRNGKey(0)
    key_small, key_big = jax.random.split(key)

    # Shape implied by the module's forward: [1, 160, 12, 12]  (~90 KiB -> small path).
    x = jax.random.normal(key_small, (1, 160, 12, 12), dtype=jnp.float32)
    y = relu_pallas(x)
    jax.block_until_ready(y)
    y_ref = jnp.maximum(x, 0.0)
    assert y.shape == x.shape and y.dtype == x.dtype
    assert jnp.allclose(y, y_ref), "mismatch vs reference ReLU (small path)"

    # Also exercise the tiled lane-dense path (still modest: ~1.4 MiB, 2 grid steps,
    # ragged last block) to make sure the streaming path compiles and masks correctly.
    x_big = jax.random.normal(key_big, (4, 160, 24, 24), dtype=jnp.float32)
    y_big = relu_pallas(x_big)
    jax.block_until_ready(y_big)
    assert jnp.allclose(y_big, jnp.maximum(x_big, 0.0)), "mismatch vs reference ReLU (tiled path)"

    print("KERNEL_OK")
</pallas_src>

<mosaic_0001>
module attributes {stable_mosaic.version = 11 : i64} {
  func.func @_relu_kernel(%arg0: memref<1x160x12x12xf32, #tpu.memory_space<vmem>>, %arg1: memref<1x160x12x12xf32, #tpu.memory_space<vmem>>) attributes {dimension_semantics = [], scalar_prefetch = 0 : i64, scratch_operands = 0 : i64, tpu.core_type = #tpu.core_type<tc>} {
    %c0 = arith.constant 0 : index
    %c0_0 = arith.constant 0 : index
    %c0_1 = arith.constant 0 : index
    %c0_2 = arith.constant 0 : index
    %0 = vector.load %arg0[%c0, %c0_0, %c0_1, %c0_2] : memref<1x160x12x12xf32, #tpu.memory_space<vmem>>, vector<1x160x12x12xf32>
    %cst = arith.constant 0.000000e+00 : f32
    %1 = vector.broadcast %cst : f32 to vector<1x160x12x12xf32>
    %2 = arith.maximumf %0, %1 : vector<1x160x12x12xf32>
    %c0_3 = arith.constant 0 : index
    %c0_4 = arith.constant 0 : index
    %c0_5 = arith.constant 0 : index
    %c0_6 = arith.constant 0 : index
    %3 = vector.load %arg1[%c0_3, %c0_4, %c0_5, %c0_6] : memref<1x160x12x12xf32, #tpu.memory_space<vmem>>, vector<1x160x12x12xf32>
    tpu.vector_store %arg1[%c0_3, %c0_4, %c0_5, %c0_6], %2 {strides = array<i32>} : memref<1x160x12x12xf32, #tpu.memory_space<vmem>>, vector<1x160x12x12xf32>,
    return
  }
}

</mosaic_0001>

<llo_original>
// kernel: tpu_custom_call.1
$region0: #{tpu_custom_call.1}
  #allocation0 [shape = 'u32[]', space=smem, size = 0x4, offset = 0x4, fixed_abs, tag = 'smem constant byte address 0x4 - core index']
  #allocation1 [shape = 'u32[72,128]{1,0:T(1,128)}', space=vmem, size = 0x9000, scoped, tag = 'internal scratch']
  %s0 = inlined_call_operand.vmem [shape: f32[1,160,12,12], index: 0, kind: input, shape index: {}]
  %s1 = inlined_call_operand.vmem [shape: f32[1,160,12,12], index: 1, kind: output, shape index: {}]
  %s2 = sld [smem:[#allocation0]]
  $region14: #{tpu_custom_call.1} parent=0
    _
  %s4 = ssub.s32 1, %s2
  %s5 = scalar_select 0, %s4, %s2
  // Predicated region
  $region2: #{tpu_custom_call.1} parent=0 // pred_check
    _
  $region3: #{tpu_custom_call.1} parent=0 // pred_check_branch
    %7 = sbr.rel (0) target = $region5
  $region4: #{tpu_custom_call.1} parent=0 // pred_region
    _
  $region5: #{tpu_custom_call.1} parent=0 // pred_fallthru
    _
  %v8 = vld [vmem:[%s0] sm:$0xff]
  %v9 = vld [vmem:[%s0 + $0x8] sm:$0xf]
  %v10 = vld [vmem:[%s0 + $0x10] sm:$0xff]
  %v11 = vld [vmem:[%s0 + $0x18] sm:$0xf]
  %v12 = vld [vmem:[%s0 + $0x20] sm:$0xff]
  %v13 = vld [vmem:[%s0 + $0x28] sm:$0xf]
  %v14 = vld [vmem:[%s0 + $0x30] sm:$0xff]
  %v15 = vld [vmem:[%s0 + $0x38] sm:$0xf]
  %v16 = vld [vmem:[%s0 + $0x40] sm:$0xff]
  %v17 = vld [vmem:[%s0 + $0x48] sm:$0xf]
  %v18 = vld [vmem:[%s0 + $0x50] sm:$0xff]
  %v19 = vld [vmem:[%s0 + $0x58] sm:$0xf]
  %v20 = vld [vmem:[%s0 + $0x60] sm:$0xff]
  %v21 = vld [vmem:[%s0 + $0x68] sm:$0xf]
  %v22 = vld [vmem:[%s0 + $0x70] sm:$0xff]
  %v23 = vld [vmem:[%s0 + $0x78] sm:$0xf]
  %v24 = vld [vmem:[%s0 + $0x80] sm:$0xff]
  %v25 = vld [vmem:[%s0 + $0x88] sm:$0xf]
  %v26 = vld [vmem:[%s0 + $0x90] sm:$0xff]
  %v27 = vld [vmem:[%s0 + $0x98] sm:$0xf]
  %v28 = vld [vmem:[%s0 + $0xa0] sm:$0xff]
  %v29 = vld [vmem:[%s0 + $0xa8] sm:$0xf]
  %v30 = vld [vmem:[%s0 + $0xb0] sm:$0xff]
  %v31 = vld [vmem:[%s0 + $0xb8] sm:$0xf]
  %v32 = vld [vmem:[%s0 + $0xc0] sm:$0xff]
  %v33 = vld [vmem:[%s0 + $0xc8] sm:$0xf]
  %v34 = vld [vmem:[%s0 + $0xd0] sm:$0xff]
  %v35 = vld [vmem:[%s0 + $0xd8] sm:$0xf]
  %v36 = vld [vmem:[%s0 + $0xe0] sm:$0xff]
  %v37 = vld [vmem:[%s0 + $0xe8] sm:$0xf]
  %v38 = vld [vmem:[%s0 + $0xf0] sm:$0xff]
  %v39 = vld [vmem:[%s0 + $0xf8] sm:$0xf]
  %v40 = vld [vmem:[%s0 + $0x100] sm:$0xff]
  %v41 = vld [vmem:[%s0 + $0x108] sm:$0xf]
  %v42 = vld [vmem:[%s0 + $0x110] sm:$0xff]
  %v43 = vld [vmem:[%s0 + $0x118] sm:$0xf]
  %v44 = vld [vmem:[%s0 + $0x120] sm:$0xff]
  %v45 = vld [vmem:[%s0 + $0x128] sm:$0xf]
  %v46 = vld [vmem:[%s0 + $0x130] sm:$0xff]
  %v47 = vld [vmem:[%s0 + $0x138] sm:$0xf]
  %v48 = vld [vmem:[%s0 + $0x140] sm:$0xff]
  %v49 = vld [vmem:[%s0 + $0x148] sm:$0xf]
  %v50 = vld [vmem:[%s0 + $0x150] sm:$0xff]
  %v51 = vld [vmem:[%s0 + $0x158] sm:$0xf]
  %v52 = vld [vmem:[%s0 + $0x160] sm:$0xff]
  %v53 = vld [vmem:[%s0 + $0x168] sm:$0xf]
  %v54 = vld [vmem:[%s0 + $0x170] sm:$0xff]
  %v55 = vld [vmem:[%s0 + $0x178] sm:$0xf]
  %v56 = vld [vmem:[%s0 + $0x180] sm:$0xff]
  %v57 = vld [vmem:[%s0 + $0x188] sm:$0xf]
  %v58 = vld [vmem:[%s0 + $0x190] sm:$0xff]
  %v59 = vld [vmem:[%s0 + $0x198] sm:$0xf]
  %v60 = vld [vmem:[%s0 + $0x1a0] sm:$0xff]
  %v61 = vld [vmem:[%s0 + $0x1a8] sm:$0xf]
  %v62 = vld [vmem:[%s0 + $0x1b0] sm:$0xff]
  %v63 = vld [vmem:[%s0 + $0x1b8] sm:$0xf]
  %v64 = vld [vmem:[%s0 + $0x1c0] sm:$0xff]
  %v65 = vld [vmem:[%s0 + $0x1c8] sm:$0xf]
  %v66 = vld [vmem:[%s0 + $0x1d0] sm:$0xff]
  %v67 = vld [vmem:[%s0 + $0x1d8] sm:$0xf]
  %v68 = vld [vmem:[%s0 + $0x1e0] sm:$0xff]
  %v69 = vld [vmem:[%s0 + $0x1e8] sm:$0xf]
  %v70 = vld [vmem:[%s0 + $0x1f0] sm:$0xff]
  %v71 = vld [vmem:[%s0 + $0x1f8] sm:$0xf]
  %v72 = vld [vmem:[%s0 + $0x200] sm:$0xff]
  %v73 = vld [vmem:[%s0 + $0x208] sm:$0xf]
  %v74 = vld [vmem:[%s0 + $0x210] sm:$0xff]
  %v75 = vld [vmem:[%s0 + $0x218] sm:$0xf]
  %v76 = vld [vmem:[%s0 + $0x220] sm:$0xff]
  %v77 = vld [vmem:[%s0 + $0x228] sm:$0xf]
  %v78 = vld [vmem:[%s0 + $0x230] sm:$0xff]
  %v79 = vld [vmem:[%s0 + $0x238] sm:$0xf]
  %v80 = vld [vmem:[%s0 + $0x240] sm:$0xff]
  %v81 = vld [vmem:[%s0 + $0x248] sm:$0xf]
  %v82 = vld [vmem:[%s0 + $0x250] sm:$0xff]
  %v83 = vld [vmem:[%s0 + $0x258] sm:$0xf]
  %v84 = vld [vmem:[%s0 + $0x260] sm:$0xff]
  %v85 = vld [vmem:[%s0 + $0x268] sm:$0xf]
  %v86 = vld [vmem:[%s0 + $0x270] sm:$0xff]
  %v87 = vld [vmem:[%s0 + $0x278] sm:$0xf]
  %v88 = vld [vmem:[%s0 + $0x280] sm:$0xff]
  %v89 = vld [vmem:[%s0 + $0x288] sm:$0xf]
  %v90 = vld [vmem:[%s0 + $0x290] sm:$0xff]
  %v91 = vld [vmem:[%s0 + $0x298] sm:$0xf]
  %v92 = vld [vmem:[%s0 + $0x2a0] sm:$0xff]
  %v93 = vld [vmem:[%s0 + $0x2a8] sm:$0xf]
  %v94 = vld [vmem:[%s0 + $0x2b0] sm:$0xff]
  %v95 = vld [vmem:[%s0 + $0x2b8] sm:$0xf]
  %v96 = vld [vmem:[%s0 + $0x2c0] sm:$0xff]
  %v97 = vld [vmem:[%s0 + $0x2c8] sm:$0xf]
  %v98 = vld [vmem:[%s0 + $0x2d0] sm:$0xff]
  %v99 = vld [vmem:[%s0 + $0x2d8] sm:$0xf]
  %v100 = vld [vmem:[%s0 + $0x2e0] sm:$0xff]
  %v101 = vld [vmem:[%s0 + $0x2e8] sm:$0xf]
  %v102 = vld [vmem:[%s0 + $0x2f0] sm:$0xff]
  %v103 = vld [vmem:[%s0 + $0x2f8] sm:$0xf]
  %v104 = vld [vmem:[%s0 + $0x300] sm:$0xff]
  %v105 = vld [vmem:[%s0 + $0x308] sm:$0xf]
  %v106 = vld [vmem:[%s0 + $0x310] sm:$0xff]
  %v107 = vld [vmem:[%s0 + $0x318] sm:$0xf]
  %v108 = vld [vmem:[%s0 + $0x320] sm:$0xff]
  %v109 = vld [vmem:[%s0 + $0x328] sm:$0xf]
  %v110 = vld [vmem:[%s0 + $0x330] sm:$0xff]
  %v111 = vld [vmem:[%s0 + $0x338] sm:$0xf]
  %v112 = vld [vmem:[%s0 + $0x340] sm:$0xff]
  %v113 = vld [vmem:[%s0 + $0x348] sm:$0xf]
  %v114 = vld [vmem:[%s0 + $0x350] sm:$0xff]
  %v115 = vld [vmem:[%s0 + $0x358] sm:$0xf]
  %v116 = vld [vmem:[%s0 + $0x360] sm:$0xff]
  %v117 = vld [vmem:[%s0 + $0x368] sm:$0xf]
  %v118 = vld [vmem:[%s0 + $0x370] sm:$0xff]
  %v119 = vld [vmem:[%s0 + $0x378] sm:$0xf]
  %v120 = vld [vmem:[%s0 + $0x380] sm:$0xff]
  %v121 = vld [vmem:[%s0 + $0x388] sm:$0xf]
  %v122 = vld [vmem:[%s0 + $0x390] sm:$0xff]
  %v123 = vld [vmem:[%s0 + $0x398] sm:$0xf]
  %v124 = vld [vmem:[%s0 + $0x3a0] sm:$0xff]
  %v125 = vld [vmem:[%s0 + $0x3a8] sm:$0xf]
  %v126 = vld [vmem:[%s0 + $0x3b0] sm:$0xff]
  %v127 = vld [vmem:[%s0 + $0x3b8] sm:$0xf]
  %v128 = vld [vmem:[%s0 + $0x3c0] sm:$0xff]
  %v129 = vld [vmem:[%s0 + $0x3c8] sm:$0xf]
  %v130 = vld [vmem:[%s0 + $0x3d0] sm:$0xff]
  %v131 = vld [vmem:[%s0 + $0x3d8] sm:$0xf]
  %v132 = vld [vmem:[%s0 + $0x3e0] sm:$0xff]
  %v133 = vld [vmem:[%s0 + $0x3e8] sm:$0xf]
  %v134 = vld [vmem:[%s0 + $0x3f0] sm:$0xff]
  %v135 = vld [vmem:[%s0 + $0x3f8] sm:$0xf]
  %v136 = vld [vmem:[%s0 + $0x400] sm:$0xff]
  %v137 = vld [vmem:[%s0 + $0x408] sm:$0xf]
  %v138 = vld [vmem:[%s0 + $0x410] sm:$0xff]
  %v139 = vld [vmem:[%s0 + $0x418] sm:$0xf]
  %v140 = vld [vmem:[%s0 + $0x420] sm:$0xff]
  %v141 = vld [vmem:[%s0 + $0x428] sm:$0xf]
  %v142 = vld [vmem:[%s0 + $0x430] sm:$0xff]
  %v143 = vld [vmem:[%s0 + $0x438] sm:$0xf]
  %v144 = vld [vmem:[%s0 + $0x440] sm:$0xff]
  %v145 = vld [vmem:[%s0 + $0x448] sm:$0xf]
  %v146 = vld [vmem:[%s0 + $0x450] sm:$0xff]
  %v147 = vld [vmem:[%s0 + $0x458] sm:$0xf]
  %v148 = vld [vmem:[%s0 + $0x460] sm:$0xff]
  %v149 = vld [vmem:[%s0 + $0x468] sm:$0xf]
  %v150 = vld [vmem:[%s0 + $0x470] sm:$0xff]
  %v151 = vld [vmem:[%s0 + $0x478] sm:$0xf]
  %v152 = vld [vmem:[%s0 + $0x480] sm:$0xff]
  %v153 = vld [vmem:[%s0 + $0x488] sm:$0xf]
  %v154 = vld [vmem:[%s0 + $0x490] sm:$0xff]
  %v155 = vld [vmem:[%s0 + $0x498] sm:$0xf]
  %v156 = vld [vmem:[%s0 + $0x4a0] sm:$0xff]
  %v157 = vld [vmem:[%s0 + $0x4a8] sm:$0xf]
  %v158 = vld [vmem:[%s0 + $0x4b0] sm:$0xff]
  %v159 = vld [vmem:[%s0 + $0x4b8] sm:$0xf]
  %v160 = vld [vmem:[%s0 + $0x4c0] sm:$0xff]
  %v161 = vld [vmem:[%s0 + $0x4c8] sm:$0xf]
  %v162 = vld [vmem:[%s0 + $0x4d0] sm:$0xff]
  %v163 = vld [vmem:[%s0 + $0x4d8] sm:$0xf]
  %v164 = vld [vmem:[%s0 + $0x4e0] sm:$0xff]
  %v165 = vld [vmem:[%s0 + $0x4e8] sm:$0xf]
  %v166 = vld [vmem:[%s0 + $0x4f0] sm:$0xff]
  %v167 = vld [vmem:[%s0 + $0x4f8] sm:$0xf]
  %v168 = vld [vmem:[%s0 + $0x500] sm:$0xff]
  %v169 = vld [vmem:[%s0 + $0x508] sm:$0xf]
  %v170 = vld [vmem:[%s0 + $0x510] sm:$0xff]
  %v171 = vld [vmem:[%s0 + $0x518] sm:$0xf]
  %v172 = vld [vmem:[%s0 + $0x520] sm:$0xff]
  %v173 = vld [vmem:[%s0 + $0x528] sm:$0xf]
  %v174 = vld [vmem:[%s0 + $0x530] sm:$0xff]
  %v175 = vld [vmem:[%s0 + $0x538] sm:$0xf]
  %v176 = vld [vmem:[%s0 + $0x540] sm:$0xff]
  %v177 = vld [vmem:[%s0 + $0x548] sm:$0xf]
  %v178 = vld [vmem:[%s0 + $0x550] sm:$0xff]
  %v179 = vld [vmem:[%s0 + $0x558] sm:$0xf]
  %v180 = vld [vmem:[%s0 + $0x560] sm:$0xff]
  %v181 = vld [vmem:[%s0 + $0x568] sm:$0xf]
  %v182 = vld [vmem:[%s0 + $0x570] sm:$0xff]
  %v183 = vld [vmem:[%s0 + $0x578] sm:$0xf]
  %v184 = vld [vmem:[%s0 + $0x580] sm:$0xff]
  %v185 = vld [vmem:[%s0 + $0x588] sm:$0xf]
  %v186 = vld [vmem:[%s0 + $0x590] sm:$0xff]
  %v187 = vld [vmem:[%s0 + $0x598] sm:$0xf]
  %v188 = vld [vmem:[%s0 + $0x5a0] sm:$0xff]
  %v189 = vld [vmem:[%s0 + $0x5a8] sm:$0xf]
  %v190 = vld [vmem:[%s0 + $0x5b0] sm:$0xff]
  %v191 = vld [vmem:[%s0 + $0x5b8] sm:$0xf]
  %v192 = vld [vmem:[%s0 + $0x5c0] sm:$0xff]
  %v193 = vld [vmem:[%s0 + $0x5c8] sm:$0xf]
  %v194 = vld [vmem:[%s0 + $0x5d0] sm:$0xff]
  %v195 = vld [vmem:[%s0 + $0x5d8] sm:$0xf]
  %v196 = vld [vmem:[%s0 + $0x5e0] sm:$0xff]
  %v197 = vld [vmem:[%s0 + $0x5e8] sm:$0xf]
  %v198 = vld [vmem:[%s0 + $0x5f0] sm:$0xff]
  %v199 = vld [vmem:[%s0 + $0x5f8] sm:$0xf]
  %v200 = vld [vmem:[%s0 + $0x600] sm:$0xff]
  %v201 = vld [vmem:[%s0 + $0x608] sm:$0xf]
  %v202 = vld [vmem:[%s0 + $0x610] sm:$0xff]
  %v203 = vld [vmem:[%s0 + $0x618] sm:$0xf]
  %v204 = vld [vmem:[%s0 + $0x620] sm:$0xff]
  %v205 = vld [vmem:[%s0 + $0x628] sm:$0xf]
  %v206 = vld [vmem:[%s0 + $0x630] sm:$0xff]
  %v207 = vld [vmem:[%s0 + $0x638] sm:$0xf]
  %v208 = vld [vmem:[%s0 + $0x640] sm:$0xff]
  %v209 = vld [vmem:[%s0 + $0x648] sm:$0xf]
  %v210 = vld [vmem:[%s0 + $0x650] sm:$0xff]
  %v211 = vld [vmem:[%s0 + $0x658] sm:$0xf]
  %v212 = vld [vmem:[%s0 + $0x660] sm:$0xff]
  %v213 = vld [vmem:[%s0 + $0x668] sm:$0xf]
  %v214 = vld [vmem:[%s0 + $0x670] sm:$0xff]
  %v215 = vld [vmem:[%s0 + $0x678] sm:$0xf]
  %v216 = vld [vmem:[%s0 + $0x680] sm:$0xff]
  %v217 = vld [vmem:[%s0 + $0x688] sm:$0xf]
  %v218 = vld [vmem:[%s0 + $0x690] sm:$0xff]
  %v219 = vld [vmem:[%s0 + $0x698] sm:$0xf]
  %v220 = vld [vmem:[%s0 + $0x6a0] sm:$0xff]
  %v221 = vld [vmem:[%s0 + $0x6a8] sm:$0xf]
  %v222 = vld [vmem:[%s0 + $0x6b0] sm:$0xff]
  %v223 = vld [vmem:[%s0 + $0x6b8] sm:$0xf]
  %v224 = vld [vmem:[%s0 + $0x6c0] sm:$0xff]
  %v225 = vld [vmem:[%s0 + $0x6c8] sm:$0xf]
  %v226 = vld [vmem:[%s0 + $0x6d0] sm:$0xff]
  %v227 = vld [vmem:[%s0 + $0x6d8] sm:$0xf]
  %v228 = vld [vmem:[%s0 + $0x6e0] sm:$0xff]
  %v229 = vld [vmem:[%s0 + $0x6e8] sm:$0xf]
  %v230 = vld [vmem:[%s0 + $0x6f0] sm:$0xff]
  %v231 = vld [vmem:[%s0 + $0x6f8] sm:$0xf]
  %v232 = vld [vmem:[%s0 + $0x700] sm:$0xff]
  %v233 = vld [vmem:[%s0 + $0x708] sm:$0xf]
  %v234 = vld [vmem:[%s0 + $0x710] sm:$0xff]
  %v235 = vld [vmem:[%s0 + $0x718] sm:$0xf]
  %v236 = vld [vmem:[%s0 + $0x720] sm:$0xff]
  %v237 = vld [vmem:[%s0 + $0x728] sm:$0xf]
  %v238 = vld [vmem:[%s0 + $0x730] sm:$0xff]
  %v239 = vld [vmem:[%s0 + $0x738] sm:$0xf]
  %v240 = vld [vmem:[%s0 + $0x740] sm:$0xff]
  %v241 = vld [vmem:[%s0 + $0x748] sm:$0xf]
  %v242 = vld [vmem:[%s0 + $0x750] sm:$0xff]
  %v243 = vld [vmem:[%s0 + $0x758] sm:$0xf]
  %v244 = vld [vmem:[%s0 + $0x760] sm:$0xff]
  %v245 = vld [vmem:[%s0 + $0x768] sm:$0xf]
  %v246 = vld [vmem:[%s0 + $0x770] sm:$0xff]
  %v247 = vld [vmem:[%s0 + $0x778] sm:$0xf]
  %v248 = vld [vmem:[%s0 + $0x780] sm:$0xff]
  %v249 = vld [vmem:[%s0 + $0x788] sm:$0xf]
  %v250 = vld [vmem:[%s0 + $0x790] sm:$0xff]
  %v251 = vld [vmem:[%s0 + $0x798] sm:$0xf]
  %v252 = vld [vmem:[%s0 + $0x7a0] sm:$0xff]
  %v253 = vld [vmem:[%s0 + $0x7a8] sm:$0xf]
  %v254 = vld [vmem:[%s0 + $0x7b0] sm:$0xff]
  %v255 = vld [vmem:[%s0 + $0x7b8] sm:$0xf]
  %v256 = vld [vmem:[%s0 + $0x7c0] sm:$0xff]
  %v257 = vld [vmem:[%s0 + $0x7c8] sm:$0xf]
  %v258 = vld [vmem:[%s0 + $0x7d0] sm:$0xff]
  %v259 = vld [vmem:[%s0 + $0x7d8] sm:$0xf]
  %v260 = vld [vmem:[%s0 + $0x7e0] sm:$0xff]
  %v261 = vld [vmem:[%s0 + $0x7e8] sm:$0xf]
  %v262 = vld [vmem:[%s0 + $0x7f0] sm:$0xff]
  %v263 = vld [vmem:[%s0 + $0x7f8] sm:$0xf]
  %v264 = vld [vmem:[%s0 + $0x800] sm:$0xff]
  %v265 = vld [vmem:[%s0 + $0x808] sm:$0xf]
  %v266 = vld [vmem:[%s0 + $0x810] sm:$0xff]
  %v267 = vld [vmem:[%s0 + $0x818] sm:$0xf]
  %v268 = vld [vmem:[%s0 + $0x820] sm:$0xff]
  %v269 = vld [vmem:[%s0 + $0x828] sm:$0xf]
  %v270 = vld [vmem:[%s0 + $0x830] sm:$0xff]
  %v271 = vld [vmem:[%s0 + $0x838] sm:$0xf]
  %v272 = vld [vmem:[%s0 + $0x840] sm:$0xff]
  %v273 = vld [vmem:[%s0 + $0x848] sm:$0xf]
  %v274 = vld [vmem:[%s0 + $0x850] sm:$0xff]
  %v275 = vld [vmem:[%s0 + $0x858] sm:$0xf]
  %v276 = vld [vmem:[%s0 + $0x860] sm:$0xff]
  %v277 = vld [vmem:[%s0 + $0x868] sm:$0xf]
  %v278 = vld [vmem:[%s0 + $0x870] sm:$0xff]
  %v279 = vld [vmem:[%s0 + $0x878] sm:$0xf]
  %v280 = vld [vmem:[%s0 + $0x880] sm:$0xff]
  %v281 = vld [vmem:[%s0 + $0x888] sm:$0xf]
  %v282 = vld [vmem:[%s0 + $0x890] sm:$0xff]
  %v283 = vld [vmem:[%s0 + $0x898] sm:$0xf]
  %v284 = vld [vmem:[%s0 + $0x8a0] sm:$0xff]
  %v285 = vld [vmem:[%s0 + $0x8a8] sm:$0xf]
  %v286 = vld [vmem:[%s0 + $0x8b0] sm:$0xff]
  %v287 = vld [vmem:[%s0 + $0x8b8] sm:$0xf]
  %v288 = vld [vmem:[%s0 + $0x8c0] sm:$0xff]
  %v289 = vld [vmem:[%s0 + $0x8c8] sm:$0xf]
  %v290 = vld [vmem:[%s0 + $0x8d0] sm:$0xff]
  %v291 = vld [vmem:[%s0 + $0x8d8] sm:$0xf]
  %v292 = vld [vmem:[%s0 + $0x8e0] sm:$0xff]
  %v293 = vld [vmem:[%s0 + $0x8e8] sm:$0xf]
  %v294 = vld [vmem:[%s0 + $0x8f0] sm:$0xff]
  %v295 = vld [vmem:[%s0 + $0x8f8] sm:$0xf]
  %v296 = vld [vmem:[%s0 + $0x900] sm:$0xff]
  %v297 = vld [vmem:[%s0 + $0x908] sm:$0xf]
  %v298 = vld [vmem:[%s0 + $0x910] sm:$0xff]
  %v299 = vld [vmem:[%s0 + $0x918] sm:$0xf]
  %v300 = vld [vmem:[%s0 + $0x920] sm:$0xff]
  %v301 = vld [vmem:[%s0 + $0x928] sm:$0xf]
  %v302 = vld [vmem:[%s0 + $0x930] sm:$0xff]
  %v303 = vld [vmem:[%s0 + $0x938] sm:$0xf]
  %v304 = vld [vmem:[%s0 + $0x940] sm:$0xff]
  %v305 = vld [vmem:[%s0 + $0x948] sm:$0xf]
  %v306 = vld [vmem:[%s0 + $0x950] sm:$0xff]
  %v307 = vld [vmem:[%s0 + $0x958] sm:$0xf]
  %v308 = vld [vmem:[%s0 + $0x960] sm:$0xff]
  %v309 = vld [vmem:[%s0 + $0x968] sm:$0xf]
  %v310 = vld [vmem:[%s0 + $0x970] sm:$0xff]
  %v311 = vld [vmem:[%s0 + $0x978] sm:$0xf]
  %v312 = vld [vmem:[%s0 + $0x980] sm:$0xff]
  %v313 = vld [vmem:[%s0 + $0x988] sm:$0xf]
  %v314 = vld [vmem:[%s0 + $0x990] sm:$0xff]
  %v315 = vld [vmem:[%s0 + $0x998] sm:$0xf]
  %v316 = vld [vmem:[%s0 + $0x9a0] sm:$0xff]
  %v317 = vld [vmem:[%s0 + $0x9a8] sm:$0xf]
  %v318 = vld [vmem:[%s0 + $0x9b0] sm:$0xff]
  %v319 = vld [vmem:[%s0 + $0x9b8] sm:$0xf]
  %v320 = vld [vmem:[%s0 + $0x9c0] sm:$0xff]
  %v321 = vld [vmem:[%s0 + $0x9c8] sm:$0xf]
  %v322 = vld [vmem:[%s0 + $0x9d0] sm:$0xff]
  %v323 = vld [vmem:[%s0 + $0x9d8] sm:$0xf]
  %v324 = vld [vmem:[%s0 + $0x9e0] sm:$0xff]
  %v325 = vld [vmem:[%s0 + $0x9e8] sm:$0xf]
  %v326 = vld [vmem:[%s0 + $0x9f0] sm:$0xff]
  %v327 = vld [vmem:[%s0 + $0x9f8] sm:$0xf]
  %v328 = vmax.f32 %v8, 0.0
  %v329 = vmax.f32 %v9, 0.0
  %v330 = vmax.f32 %v10, 0.0
  %v331 = vmax.f32 %v11, 0.0
  %v332 = vmax.f32 %v12, 0.0
  %v333 = vmax.f32 %v13, 0.0
  %v334 = vmax.f32 %v14, 0.0
  %v335 = vmax.f32 %v15, 0.0
  %v336 = vmax.f32 %v16, 0.0
  %v337 = vmax.f32 %v17, 0.0
  %v338 = vmax.f32 %v18, 0.0
  %v339 = vmax.f32 %v19, 0.0
  %v340 = vmax.f32 %v20, 0.0
  %v341 = vmax.f32 %v21, 0.0
  %v342 = vmax.f32 %v22, 0.0
  %v343 = vmax.f32 %v23, 0.0
  %v344 = vmax.f32 %v24, 0.0
  %v345 = vmax.f32 %v25, 0.0
  %v346 = vmax.f32 %v26, 0.0
  %v347 = vmax.f32 %v27, 0.0
  %v348 = vmax.f32 %v28, 0.0
  %v349 = vmax.f32 %v29, 0.0
  %v350 = vmax.f32 %v30, 0.0
  %v351 = vmax.f32 %v31, 0.0
  %v352 = vmax.f32 %v32, 0.0
  %v353 = vmax.f32 %v33, 0.0
  %v354 = vmax.f32 %v34, 0.0
  %v355 = vmax.f32 %v35, 0.0
  %v356 = vmax.f32 %v36, 0.0
  %v357 = vmax.f32 %v37, 0.0
  %v358 = vmax.f32 %v38, 0.0
  %v359 = vmax.f32 %v39, 0.0
  %v360 = vmax.f32 %v40, 0.0
  %v361 = vmax.f32 %v41, 0.0
  %v362 = vmax.f32 %v42, 0.0
  %v363 = vmax.f32 %v43, 0.0
  %v364 = vmax.f32 %v44, 0.0
  %v365 = vmax.f32 %v45, 0.0
  %v366 = vmax.f32 %v46, 0.0
  %v367 = vmax.f32 %v47, 0.0
  %v368 = vmax.f32 %v48, 0.0
  %v369 = vmax.f32 %v49, 0.0
  %v370 = vmax.f32 %v50, 0.0
  %v371 = vmax.f32 %v51, 0.0
  %v372 = vmax.f32 %v52, 0.0
  %v373 = vmax.f32 %v53, 0.0
  %v374 = vmax.f32 %v54, 0.0
  %v375 = vmax.f32 %v55, 0.0
  %v376 = vmax.f32 %v56, 0.0
  %v377 = vmax.f32 %v57, 0.0
  %v378 = vmax.f32 %v58, 0.0
  %v379 = vmax.f32 %v59, 0.0
  %v380 = vmax.f32 %v60, 0.0
  %v381 = vmax.f32 %v61, 0.0
  %v382 = vmax.f32 %v62, 0.0
  %v383 = vmax.f32 %v63, 0.0
  %v384 = vmax.f32 %v64, 0.0
  %v385 = vmax.f32 %v65, 0.0
  %v386 = vmax.f32 %v66, 0.0
  %v387 = vmax.f32 %v67, 0.0
  %v388 = vmax.f32 %v68, 0.0
  %v389 = vmax.f32 %v69, 0.0
  %v390 = vmax.f32 %v70, 0.0
  %v391 = vmax.f32 %v71, 0.0
  %v392 = vmax.f32 %v72, 0.0
  %v393 = vmax.f32 %v73, 0.0
  %v394 = vmax.f32 %v74, 0.0
  %v395 = vmax.f32 %v75, 0.0
  %v396 = vmax.f32 %v76, 0.0
  %v397 = vmax.f32 %v77, 0.0
  %v398 = vmax.f32 %v78, 0.0
  %v399 = vmax.f32 %v79, 0.0
  %v400 = vmax.f32 %v80, 0.0
  %v401 = vmax.f32 %v81, 0.0
  %v402 = vmax.f32 %v82, 0.0
  %v403 = vmax.f32 %v83, 0.0
  %v404 = vmax.f32 %v84, 0.0
  %v405 = vmax.f32 %v85, 0.0
  %v406 = vmax.f32 %v86, 0.0
  %v407 = vmax.f32 %v87, 0.0
  %v408 = vmax.f32 %v88, 0.0
  %v409 = vmax.f32 %v89, 0.0
  %v410 = vmax.f32 %v90, 0.0
  %v411 = vmax.f32 %v91, 0.0
  %v412 = vmax.f32 %v92, 0.0
  %v413 = vmax.f32 %v93, 0.0
  %v414 = vmax.f32 %v94, 0.0
  %v415 = vmax.f32 %v95, 0.0
  %v416 = vmax.f32 %v96, 0.0
  %v417 = vmax.f32 %v97, 0.0
  %v418 = vmax.f32 %v98, 0.0
  %v419 = vmax.f32 %v99, 0.0
  %v420 = vmax.f32 %v100, 0.0
  %v421 = vmax.f32 %v101, 0.0
  %v422 = vmax.f32 %v102, 0.0
  %v423 = vmax.f32 %v103, 0.0
  %v424 = vmax.f32 %v104, 0.0
  %v425 = vmax.f32 %v105, 0.0
  %v426 = vmax.f32 %v106, 0.0
  %v427 = vmax.f32 %v107, 0.0
  %v428 = vmax.f32 %v108, 0.0
  %v429 = vmax.f32 %v109, 0.0
  %v430 = vmax.f32 %v110, 0.0
  %v431 = vmax.f32 %v111, 0.0
  %v432 = vmax.f32 %v112, 0.0
  %v433 = vmax.f32 %v113, 0.0
  %v434 = vmax.f32 %v114, 0.0
  %v435 = vmax.f32 %v115, 0.0
  %v436 = vmax.f32 %v116, 0.0
  %v437 = vmax.f32 %v117, 0.0
  %v438 = vmax.f32 %v118, 0.0
  %v439 = vmax.f32 %v119, 0.0
  %v440 = vmax.f32 %v120, 0.0
  %v441 = vmax.f32 %v121, 0.0
  %v442 = vmax.f32 %v122, 0.0
  %v443 = vmax.f32 %v123, 0.0
  %v444 = vmax.f32 %v124, 0.0
  %v445 = vmax.f32 %v125, 0.0
  %v446 = vmax.f32 %v126, 0.0
  %v447 = vmax.f32 %v127, 0.0
  %v448 = vmax.f32 %v128, 0.0
  %v449 = vmax.f32 %v129, 0.0
  %v450 = vmax.f32 %v130, 0.0
  %v451 = vmax.f32 %v131, 0.0
  %v452 = vmax.f32 %v132, 0.0
  %v453 = vmax.f32 %v133, 0.0
  %v454 = vmax.f32 %v134, 0.0
  %v455 = vmax.f32 %v135, 0.0
  %v456 = vmax.f32 %v136, 0.0
  %v457 = vmax.f32 %v137, 0.0
  %v458 = vmax.f32 %v138, 0.0
  %v459 = vmax.f32 %v139, 0.0
  %v460 = vmax.f32 %v140, 0.0
  %v461 = vmax.f32 %v141, 0.0
  %v462 = vmax.f32 %v142, 0.0
  %v463 = vmax.f32 %v143, 0.0
  %v464 = vmax.f32 %v144, 0.0
  %v465 = vmax.f32 %v145, 0.0
  %v466 = vmax.f32 %v146, 0.0
  %v467 = vmax.f32 %v147, 0.0
  %v468 = vmax.f32 %v148, 0.0
  %v469 = vmax.f32 %v149, 0.0
  %v470 = vmax.f32 %v150, 0.0
  %v471 = vmax.f32 %v151, 0.0
  %v472 = vmax.f32 %v152, 0.0
  %v473 = vmax.f32 %v153, 0.0
  %v474 = vmax.f32 %v154, 0.0
  %v475 = vmax.f32 %v155, 0.0
  %v476 = vmax.f32 %v156, 0.0
  %v477 = vmax.f32 %v157, 0.0
  %v478 = vmax.f32 %v158, 0.0
  %v479 = vmax.f32 %v159, 0.0
  %v480 = vmax.f32 %v160, 0.0
  %v481 = vmax.f32 %v161, 0.0
  %v482 = vmax.f32 %v162, 0.0
  %v483 = vmax.f32 %v163, 0.0
  %v484 = vmax.f32 %v164, 0.0
  %v485 = vmax.f32 %v165, 0.0
  %v486 = vmax.f32 %v166, 0.0
  %v487 = vmax.f32 %v167, 0.0
  %v488 = vmax.f32 %v168, 0.0
  %v489 = vmax.f32 %v169, 0.0
  %v490 = vmax.f32 %v170, 0.0
  %v491 = vmax.f32 %v171, 0.0
  %v492 = vmax.f32 %v172, 0.0
  %v493 = vmax.f32 %v173, 0.0
  %v494 = vmax.f32 %v174, 0.0
  %v495 = vmax.f32 %v175, 0.0
  %v496 = vmax.f32 %v176, 0.0
  %v497 = vmax.f32 %v177, 0.0
  %v498 = vmax.f32 %v178, 0.0
  %v499 = vmax.f32 %v179, 0.0
  %v500 = vmax.f32 %v180, 0.0
  %v501 = vmax.f32 %v181, 0.0
  %v502 = vmax.f32 %v182, 0.0
  %v503 = vmax.f32 %v183, 0.0
  %v504 = vmax.f32 %v184, 0.0
  %v505 = vmax.f32 %v185, 0.0
  %v506 = vmax.f32 %v186, 0.0
  %v507 = vmax.f32 %v187, 0.0
  %v508 = vmax.f32 %v188, 0.0
  %v509 = vmax.f32 %v189, 0.0
  %v510 = vmax.f32 %v190, 0.0
  %v511 = vmax.f32 %v191, 0.0
  %v512 = vmax.f32 %v192, 0.0
  %v513 = vmax.f32 %v193, 0.0
  %v514 = vmax.f32 %v194, 0.0
  %v515 = vmax.f32 %v195, 0.0
  %v516 = vmax.f32 %v196, 0.0
  %v517 = vmax.f32 %v197, 0.0
  %v518 = vmax.f32 %v198, 0.0
  %v519 = vmax.f32 %v199, 0.0
  %v520 = vmax.f32 %v200, 0.0
  %v521 = vmax.f32 %v201, 0.0
  %v522 = vmax.f32 %v202, 0.0
  %v523 = vmax.f32 %v203, 0.0
  %v524 = vmax.f32 %v204, 0.0
  %v525 = vmax.f32 %v205, 0.0
  %v526 = vmax.f32 %v206, 0.0
  %v527 = vmax.f32 %v207, 0.0
  %v528 = vmax.f32 %v208, 0.0
  %v529 = vmax.f32 %v209, 0.0
  %v530 = vmax.f32 %v210, 0.0
  %v531 = vmax.f32 %v211, 0.0
  %v532 = vmax.f32 %v212, 0.0
  %v533 = vmax.f32 %v213, 0.0
  %v534 = vmax.f32 %v214, 0.0
  %v535 = vmax.f32 %v215, 0.0
  %v536 = vmax.f32 %v216, 0.0
  %v537 = vmax.f32 %v217, 0.0
  %v538 = vmax.f32 %v218, 0.0
  %v539 = vmax.f32 %v219, 0.0
  %v540 = vmax.f32 %v220, 0.0
  %v541 = vmax.f32 %v221, 0.0
  %v542 = vmax.f32 %v222, 0.0
  %v543 = vmax.f32 %v223, 0.0
  %v544 = vmax.f32 %v224, 0.0
  %v545 = vmax.f32 %v225, 0.0
  %v546 = vmax.f32 %v226, 0.0
  %v547 = vmax.f32 %v227, 0.0
  %v548 = vmax.f32 %v228, 0.0
  %v549 = vmax.f32 %v229, 0.0
  %v550 = vmax.f32 %v230, 0.0
  %v551 = vmax.f32 %v231, 0.0
  %v552 = vmax.f32 %v232, 0.0
  %v553 = vmax.f32 %v233, 0.0
  %v554 = vmax.f32 %v234, 0.0
  %v555 = vmax.f32 %v235, 0.0
  %v556 = vmax.f32 %v236, 0.0
  %v557 = vmax.f32 %v237, 0.0
  %v558 = vmax.f32 %v238, 0.0
  %v559 = vmax.f32 %v239, 0.0
  %v560 = vmax.f32 %v240, 0.0
  %v561 = vmax.f32 %v241, 0.0
  %v562 = vmax.f32 %v242, 0.0
  %v563 = vmax.f32 %v243, 0.0
  %v564 = vmax.f32 %v244, 0.0
  %v565 = vmax.f32 %v245, 0.0
  %v566 = vmax.f32 %v246, 0.0
  %v567 = vmax.f32 %v247, 0.0
  %v568 = vmax.f32 %v248, 0.0
  %v569 = vmax.f32 %v249, 0.0
  %v570 = vmax.f32 %v250, 0.0
  %v571 = vmax.f32 %v251, 0.0
  %v572 = vmax.f32 %v252, 0.0
  %v573 = vmax.f32 %v253, 0.0
  %v574 = vmax.f32 %v254, 0.0
  %v575 = vmax.f32 %v255, 0.0
  %v576 = vmax.f32 %v256, 0.0
  %v577 = vmax.f32 %v257, 0.0
  %v578 = vmax.f32 %v258, 0.0
  %v579 = vmax.f32 %v259, 0.0
  %v580 = vmax.f32 %v260, 0.0
  %v581 = vmax.f32 %v261, 0.0
  %v582 = vmax.f32 %v262, 0.0
  %v583 = vmax.f32 %v263, 0.0
  %v584 = vmax.f32 %v264, 0.0
  %v585 = vmax.f32 %v265, 0.0
  %v586 = vmax.f32 %v266, 0.0
  %v587 = vmax.f32 %v267, 0.0
  %v588 = vmax.f32 %v268, 0.0
  %v589 = vmax.f32 %v269, 0.0
  %v590 = vmax.f32 %v270, 0.0
  %v591 = vmax.f32 %v271, 0.0
  %v592 = vmax.f32 %v272, 0.0
  %v593 = vmax.f32 %v273, 0.0
  %v594 = vmax.f32 %v274, 0.0
  %v595 = vmax.f32 %v275, 0.0
  %v596 = vmax.f32 %v276, 0.0
  %v597 = vmax.f32 %v277, 0.0
  %v598 = vmax.f32 %v278, 0.0
  %v599 = vmax.f32 %v279, 0.0
  %v600 = vmax.f32 %v280, 0.0
  %v601 = vmax.f32 %v281, 0.0
  %v602 = vmax.f32 %v282, 0.0
  %v603 = vmax.f32 %v283, 0.0
  %v604 = vmax.f32 %v284, 0.0
  %v605 = vmax.f32 %v285, 0.0
  %v606 = vmax.f32 %v286, 0.0
  %v607 = vmax.f32 %v287, 0.0
  %v608 = vmax.f32 %v288, 0.0
  %v609 = vmax.f32 %v289, 0.0
  %v610 = vmax.f32 %v290, 0.0
  %v611 = vmax.f32 %v291, 0.0
  %v612 = vmax.f32 %v292, 0.0
  %v613 = vmax.f32 %v293, 0.0
  %v614 = vmax.f32 %v294, 0.0
  %v615 = vmax.f32 %v295, 0.0
  %v616 = vmax.f32 %v296, 0.0
  %v617 = vmax.f32 %v297, 0.0
  %v618 = vmax.f32 %v298, 0.0
  %v619 = vmax.f32 %v299, 0.0
  %v620 = vmax.f32 %v300, 0.0
  %v621 = vmax.f32 %v301, 0.0
  %v622 = vmax.f32 %v302, 0.0
  %v623 = vmax.f32 %v303, 0.0
  %v624 = vmax.f32 %v304, 0.0
  %v625 = vmax.f32 %v305, 0.0
  %v626 = vmax.f32 %v306, 0.0
  %v627 = vmax.f32 %v307, 0.0
  %v628 = vmax.f32 %v308, 0.0
  %v629 = vmax.f32 %v309, 0.0
  %v630 = vmax.f32 %v310, 0.0
  %v631 = vmax.f32 %v311, 0.0
  %v632 = vmax.f32 %v312, 0.0
  %v633 = vmax.f32 %v313, 0.0
  %v634 = vmax.f32 %v314, 0.0
  %v635 = vmax.f32 %v315, 0.0
  %v636 = vmax.f32 %v316, 0.0
  %v637 = vmax.f32 %v317, 0.0
  %v638 = vmax.f32 %v318, 0.0
  %v639 = vmax.f32 %v319, 0.0
  %v640 = vmax.f32 %v320, 0.0
  %v641 = vmax.f32 %v321, 0.0
  %v642 = vmax.f32 %v322, 0.0
  %v643 = vmax.f32 %v323, 0.0
  %v644 = vmax.f32 %v324, 0.0
  %v645 = vmax.f32 %v325, 0.0
  %v646 = vmax.f32 %v326, 0.0
  %v647 = vmax.f32 %v327, 0.0
  %vm648 = vcmask 97280
  %649 = vst.msk [vmem:[%s1] sm:$0xff] %vm648, %v328
  %vm650 = vcmask 93184
  %651 = vst.msk [vmem:[%s1 + $0x8] sm:$0xf] %vm650, %v329
  %652 = vst.msk [vmem:[%s1 + $0x10] sm:$0xff] %vm648, %v330
  %653 = vst.msk [vmem:[%s1 + $0x18] sm:$0xf] %vm650, %v331
  %654 = vst.msk [vmem:[%s1 + $0x20] sm:$0xff] %vm648, %v332
  %655 = vst.msk [vmem:[%s1 + $0x28] sm:$0xf] %vm650, %v333
  %656 = vst.msk [vmem:[%s1 + $0x30] sm:$0xff] %vm648, %v334
  %657 = vst.msk [vmem:[%s1 + $0x38] sm:$0xf] %vm650, %v335
  %658 = vst.msk [vmem:[%s1 + $0x40] sm:$0xff] %vm648, %v336
  %659 = vst.msk [vmem:[%s1 + $0x48] sm:$0xf] %vm650, %v337
  %660 = vst.msk [vmem:[%s1 + $0x50] sm:$0xff] %vm648, %v338
  %661 = vst.msk [vmem:[%s1 + $0x58] sm:$0xf] %vm650, %v339
  %662 = vst.msk [vmem:[%s1 + $0x60] sm:$0xff] %vm648, %v340
  %663 = vst.msk [vmem:[%s1 + $0x68] sm:$0xf] %vm650, %v341
  %664 = vst.msk [vmem:[%s1 + $0x70] sm:$0xff] %vm648, %v342
  %665 = vst.msk [vmem:[%s1 + $0x78] sm:$0xf] %vm650, %v343
  %666 = vst.msk [vmem:[%s1 + $0x80] sm:$0xff] %vm648, %v344
  %667 = vst.msk [vmem:[%s1 + $0x88] sm:$0xf] %vm650, %v345
  %668 = vst.msk [vmem:[%s1 + $0x90] sm:$0xff] %vm648, %v346
  %669 = vst.msk [vmem:[%s1 + $0x98] sm:$0xf] %vm650, %v347
  %670 = vst.msk [vmem:[%s1 + $0xa0] sm:$0xff] %vm648, %v348
  %671 = vst.msk [vmem:[%s1 + $0xa8] sm:$0xf] %vm650, %v349
  %672 = vst.msk [vmem:[%s1 + $0xb0] sm:$0xff] %vm648, %v350
  %673 = vst.msk [vmem:[%s1 + $0xb8] sm:$0xf] %vm650, %v351
  %674 = vst.msk [vmem:[%s1 + $0xc0] sm:$0xff] %vm648, %v352
  %675 = vst.msk [vmem:[%s1 + $0xc8] sm:$0xf] %vm650, %v353
  %676 = vst.msk [vmem:[%s1 + $0xd0] sm:$0xff] %vm648, %v354
  %677 = vst.msk [vmem:[%s1 + $0xd8] sm:$0xf] %vm650, %v355
  %678 = vst.msk [vmem:[%s1 + $0xe0] sm:$0xff] %vm648, %v356
  %679 = vst.msk [vmem:[%s1 + $0xe8] sm:$0xf] %vm650, %v357
  %680 = vst.msk [vmem:[%s1 + $0xf0] sm:$0xff] %vm648, %v358
  %681 = vst.msk [vmem:[%s1 + $0xf8] sm:$0xf] %vm650, %v359
  %682 = vst.msk [vmem:[%s1 + $0x100] sm:$0xff] %vm648, %v360
  %683 = vst.msk [vmem:[%s1 + $0x108] sm:$0xf] %vm650, %v361
  %684 = vst.msk [vmem:[%s1 + $0x110] sm:$0xff] %vm648, %v362
  %685 = vst.msk [vmem:[%s1 + $0x118] sm:$0xf] %vm650, %v363
  %686 = vst.msk [vmem:[%s1 + $0x120] sm:$0xff] %vm648, %v364
  %687 = vst.msk [vmem:[%s1 + $0x128] sm:$0xf] %vm650, %v365
  %688 = vst.msk [vmem:[%s1 + $0x130] sm:$0xff] %vm648, %v366
  %689 = vst.msk [vmem:[%s1 + $0x138] sm:$0xf] %vm650, %v367
  %690 = vst.msk [vmem:[%s1 + $0x140] sm:$0xff] %vm648, %v368
  %691 = vst.msk [vmem:[%s1 + $0x148] sm:$0xf] %vm650, %v369
  %692 = vst.msk [vmem:[%s1 + $0x150] sm:$0xff] %vm648, %v370
  %693 = vst.msk [vmem:[%s1 + $0x158] sm:$0xf] %vm650, %v371
  %694 = vst.msk [vmem:[%s1 + $0x160] sm:$0xff] %vm648, %v372
  %695 = vst.msk [vmem:[%s1 + $0x168] sm:$0xf] %vm650, %v373
  %696 = vst.msk [vmem:[%s1 + $0x170] sm:$0xff] %vm648, %v374
  %697 = vst.msk [vmem:[%s1 + $0x178] sm:$0xf] %vm650, %v375
  %698 = vst.msk [vmem:[%s1 + $0x180] sm:$0xff] %vm648, %v376
  %699 = vst.msk [vmem:[%s1 + $0x188] sm:$0xf] %vm650, %v377
  %700 = vst.msk [vmem:[%s1 + $0x190] sm:$0xff] %vm648, %v378
  %701 = vst.msk [vmem:[%s1 + $0x198] sm:$0xf] %vm650, %v379
  %702 = vst.msk [vmem:[%s1 + $0x1a0] sm:$0xff] %vm648, %v380
  %703 = vst.msk [vmem:[%s1 + $0x1a8] sm:$0xf] %vm650, %v381
  %704 = vst.msk [vmem:[%s1 + $0x1b0] sm:$0xff] %vm648, %v382
  %705 = vst.msk [vmem:[%s1 + $0x1b8] sm:$0xf] %vm650, %v383
  %706 = vst.msk [vmem:[%s1 + $0x1c0] sm:$0xff] %vm648, %v384
  %707 = vst.msk [vmem:[%s1 + $0x1c8] sm:$0xf] %vm650, %v385
  %708 = vst.msk [vmem:[%s1 + $0x1d0] sm:$0xff] %vm648, %v386
  %709 = vst.msk [vmem:[%s1 + $0x1d8] sm:$0xf] %vm650, %v387
  %710 = vst.msk [vmem:[%s1 + $0x1e0] sm:$0xff] %vm648, %v388
  %711 = vst.msk [vmem:[%s1 + $0x1e8] sm:$0xf] %vm650, %v389
  %712 = vst.msk [vmem:[%s1 + $0x1f0] sm:$0xff] %vm648, %v390
  %713 = vst.msk [vmem:[%s1 + $0x1f8] sm:$0xf] %vm650, %v391
  %714 = vst.msk [vmem:[%s1 + $0x200] sm:$0xff] %vm648, %v392
  %715 = vst.msk [vmem:[%s1 + $0x208] sm:$0xf] %vm650, %v393
  %716 = vst.msk [vmem:[%s1 + $0x210] sm:$0xff] %vm648, %v394
  %717 = vst.msk [vmem:[%s1 + $0x218] sm:$0xf] %vm650, %v395
  %718 = vst.msk [vmem:[%s1 + $0x220] sm:$0xff] %vm648, %v396
  %719 = vst.msk [vmem:[%s1 + $0x228] sm:$0xf] %vm650, %v397
  %720 = vst.msk [vmem:[%s1 + $0x230] sm:$0xff] %vm648, %v398
  %721 = vst.msk [vmem:[%s1 + $0x238] sm:$0xf] %vm650, %v399
  %722 = vst.msk [vmem:[%s1 + $0x240] sm:$0xff] %vm648, %v400
  %723 = vst.msk [vmem:[%s1 + $0x248] sm:$0xf] %vm650, %v401
  %724 = vst.msk [vmem:[%s1 + $0x250] sm:$0xff] %vm648, %v402
  %725 = vst.msk [vmem:[%s1 + $0x258] sm:$0xf] %vm650, %v403
  %726 = vst.msk [vmem:[%s1 + $0x260] sm:$0xff] %vm648, %v404
  %727 = vst.msk [vmem:[%s1 + $0x268] sm:$0xf] %vm650, %v405
  %728 = vst.msk [vmem:[%s1 + $0x270] sm:$0xff] %vm648, %v406
  %729 = vst.msk [vmem:[%s1 + $0x278] sm:$0xf] %vm650, %v407
  %730 = vst.msk [vmem:[%s1 + $0x280] sm:$0xff] %vm648, %v408
  %731 = vst.msk [vmem:[%s1 + $0x288] sm:$0xf] %vm650, %v409
  %732 = vst.msk [vmem:[%s1 + $0x290] sm:$0xff] %vm648, %v410
  %733 = vst.msk [vmem:[%s1 + $0x298] sm:$0xf] %vm650, %v411
  %734 = vst.msk [vmem:[%s1 + $0x2a0] sm:$0xff] %vm648, %v412
  %735 = vst.msk [vmem:[%s1 + $0x2a8] sm:$0xf] %vm650, %v413
  %736 = vst.msk [vmem:[%s1 + $0x2b0] sm:$0xff] %vm648, %v414
  %737 = vst.msk [vmem:[%s1 + $0x2b8] sm:$0xf] %vm650, %v415
  %738 = vst.msk [vmem:[%s1 + $0x2c0] sm:$0xff] %vm648, %v416
  %739 = vst.msk [vmem:[%s1 + $0x2c8] sm:$0xf] %vm650, %v417
  %740 = vst.msk [vmem:[%s1 + $0x2d0] sm:$0xff] %vm648, %v418
  %741 = vst.msk [vmem:[%s1 + $0x2d8] sm:$0xf] %vm650, %v419
  %742 = vst.msk [vmem:[%s1 + $0x2e0] sm:$0xff] %vm648, %v420
  %743 = vst.msk [vmem:[%s1 + $0x2e8] sm:$0xf] %vm650, %v421
  %744 = vst.msk [vmem:[%s1 + $0x2f0] sm:$0xff] %vm648, %v422
  %745 = vst.msk [vmem:[%s1 + $0x2f8] sm:$0xf] %vm650, %v423
  %746 = vst.msk [vmem:[%s1 + $0x300] sm:$0xff] %vm648, %v424
  %747 = vst.msk [vmem:[%s1 + $0x308] sm:$0xf] %vm650, %v425
  %748 = vst.msk [vmem:[%s1 + $0x310] sm:$0xff] %vm648, %v426
  %749 = vst.msk [vmem:[%s1 + $0x318] sm:$0xf] %vm650, %v427
  %750 = vst.msk [vmem:[%s1 + $0x320] sm:$0xff] %vm648, %v428
  %751 = vst.msk [vmem:[%s1 + $0x328] sm:$0xf] %vm650, %v429
  %752 = vst.msk [vmem:[%s1 + $0x330] sm:$0xff] %vm648, %v430
  %753 = vst.msk [vmem:[%s1 + $0x338] sm:$0xf] %vm650, %v431
  %754 = vst.msk [vmem:[%s1 + $0x340] sm:$0xff] %vm648, %v432
  %755 = vst.msk [vmem:[%s1 + $0x348] sm:$0xf] %vm650, %v433
  %756 = vst.msk [vmem:[%s1 + $0x350] sm:$0xff] %vm648, %v434
  %757 = vst.msk [vmem:[%s1 + $0x358] sm:$0xf] %vm650, %v435
  %758 = vst.msk [vmem:[%s1 + $0x360] sm:$0xff] %vm648, %v436
  %759 = vst.msk [vmem:[%s1 + $0x368] sm:$0xf] %vm650, %v437
  %760 = vst.msk [vmem:[%s1 + $0x370] sm:$0xff] %vm648, %v438
  %761 = vst.msk [vmem:[%s1 + $0x378] sm:$0xf] %vm650, %v439
  %762 = vst.msk [vmem:[%s1 + $0x380] sm:$0xff] %vm648, %v440
  %763 = vst.msk [vmem:[%s1 + $0x388] sm:$0xf] %vm650, %v441
  %764 = vst.msk [vmem:[%s1 + $0x390] sm:$0xff] %vm648, %v442
  %765 = vst.msk [vmem:[%s1 + $0x398] sm:$0xf] %vm650, %v443
  %766 = vst.msk [vmem:[%s1 + $0x3a0] sm:$0xff] %vm648, %v444
  %767 = vst.msk [vmem:[%s1 + $0x3a8] sm:$0xf] %vm650, %v445
  %768 = vst.msk [vmem:[%s1 + $0x3b0] sm:$0xff] %vm648, %v446
  %769 = vst.msk [vmem:[%s1 + $0x3b8] sm:$0xf] %vm650, %v447
  %770 = vst.msk [vmem:[%s1 + $0x3c0] sm:$0xff] %vm648, %v448
  %771 = vst.msk [vmem:[%s1 + $0x3c8] sm:$0xf] %vm650, %v449
  %772 = vst.msk [vmem:[%s1 + $0x3d0] sm:$0xff] %vm648, %v450
  %773 = vst.msk [vmem:[%s1 + $0x3d8] sm:$0xf] %vm650, %v451
  %774 = vst.msk [vmem:[%s1 + $0x3e0] sm:$0xff] %vm648, %v452
  %775 = vst.msk [vmem:[%s1 + $0x3e8] sm:$0xf] %vm650, %v453
  %776 = vst.msk [vmem:[%s1 + $0x3f0] sm:$0xff] %vm648, %v454
  %777 = vst.msk [vmem:[%s1 + $0x3f8] sm:$0xf] %vm650, %v455
  %778 = vst.msk [vmem:[%s1 + $0x400] sm:$0xff] %vm648, %v456
  %779 = vst.msk [vmem:[%s1 + $0x408] sm:$0xf] %vm650, %v457
  %780 = vst.msk [vmem:[%s1 + $0x410] sm:$0xff] %vm648, %v458
  %781 = vst.msk [vmem:[%s1 + $0x418] sm:$0xf] %vm650, %v459
  %782 = vst.msk [vmem:[%s1 + $0x420] sm:$0xff] %vm648, %v460
  %783 = vst.msk [vmem:[%s1 + $0x428] sm:$0xf] %vm650, %v461
  %784 = vst.msk [vmem:[%s1 + $0x430] sm:$0xff] %vm648, %v462
  %785 = vst.msk [vmem:[%s1 + $0x438] sm:$0xf] %vm650, %v463
  %786 = vst.msk [vmem:[%s1 + $0x440] sm:$0xff] %vm648, %v464
  %787 = vst.msk [vmem:[%s1 + $0x448] sm:$0xf] %vm650, %v465
  %788 = vst.msk [vmem:[%s1 + $0x450] sm:$0xff] %vm648, %v466
  %789 = vst.msk [vmem:[%s1 + $0x458] sm:$0xf] %vm650, %v467
  %790 = vst.msk [vmem:[%s1 + $0x460] sm:$0xff] %vm648, %v468
  %791 = vst.msk [vmem:[%s1 + $0x468] sm:$0xf] %vm650, %v469
  %792 = vst.msk [vmem:[%s1 + $0x470] sm:$0xff] %vm648, %v470
  %793 = vst.msk [vmem:[%s1 + $0x478] sm:$0xf] %vm650, %v471
  %794 = vst.msk [vmem:[%s1 + $0x480] sm:$0xff] %vm648, %v472
  %795 = vst.msk [vmem:[%s1 + $0x488] sm:$0xf] %vm650, %v473
  %796 = vst.msk [vmem:[%s1 + $0x490] sm:$0xff] %vm648, %v474
  %797 = vst.msk [vmem:[%s1 + $0x498] sm:$0xf] %vm650, %v475
  %798 = vst.msk [vmem:[%s1 + $0x4a0] sm:$0xff] %vm648, %v476
  %799 = vst.msk [vmem:[%s1 + $0x4a8] sm:$0xf] %vm650, %v477
  %800 = vst.msk [vmem:[%s1 + $0x4b0] sm:$0xff] %vm648, %v478
  %801 = vst.msk [vmem:[%s1 + $0x4b8] sm:$0xf] %vm650, %v479
  %802 = vst.msk [vmem:[%s1 + $0x4c0] sm:$0xff] %vm648, %v480
  %803 = vst.msk [vmem:[%s1 + $0x4c8] sm:$0xf] %vm650, %v481
  %804 = vst.msk [vmem:[%s1 + $0x4d0] sm:$0xff] %vm648, %v482
  %805 = vst.msk [vmem:[%s1 + $0x4d8] sm:$0xf] %vm650, %v483
  %806 = vst.msk [vmem:[%s1 + $0x4e0] sm:$0xff] %vm648, %v484
  %807 = vst.msk [vmem:[%s1 + $0x4e8] sm:$0xf] %vm650, %v485
  %808 = vst.msk [vmem:[%s1 + $0x4f0] sm:$0xff] %vm648, %v486
  %809 = vst.msk [vmem:[%s1 + $0x4f8] sm:$0xf] %vm650, %v487
  %810 = vst.msk [vmem:[%s1 + $0x500] sm:$0xff] %vm648, %v488
  %811 = vst.msk [vmem:[%s1 + $0x508] sm:$0xf] %vm650, %v489
  %812 = vst.msk [vmem:[%s1 + $0x510] sm:$0xff] %vm648, %v490
  %813 = vst.msk [vmem:[%s1 + $0x518] sm:$0xf] %vm650, %v491
  %814 = vst.msk [vmem:[%s1 + $0x520] sm:$0xff] %vm648, %v492
  %815 = vst.msk [vmem:[%s1 + $0x528] sm:$0xf] %vm650, %v493
  %816 = vst.msk [vmem:[%s1 + $0x530] sm:$0xff] %vm648, %v494
  %817 = vst.msk [vmem:[%s1 + $0x538] sm:$0xf] %vm650, %v495
  %818 = vst.msk [vmem:[%s1 + $0x540] sm:$0xff] %vm648, %v496
  %819 = vst.msk [vmem:[%s1 + $0x548] sm:$0xf] %vm650, %v497
  %820 = vst.msk [vmem:[%s1 + $0x550] sm:$0xff] %vm648, %v498
  %821 = vst.msk [vmem:[%s1 + $0x558] sm:$0xf] %vm650, %v499
  %822 = vst.msk [vmem:[%s1 + $0x560] sm:$0xff] %vm648, %v500
  %823 = vst.msk [vmem:[%s1 + $0x568] sm:$0xf] %vm650, %v501
  %824 = vst.msk [vmem:[%s1 + $0x570] sm:$0xff] %vm648, %v502
  %825 = vst.msk [vmem:[%s1 + $0x578] sm:$0xf] %vm650, %v503
  %826 = vst.msk [vmem:[%s1 + $0x580] sm:$0xff] %vm648, %v504
  %827 = vst.msk [vmem:[%s1 + $0x588] sm:$0xf] %vm650, %v505
  %828 = vst.msk [vmem:[%s1 + $0x590] sm:$0xff] %vm648, %v506
  %829 = vst.msk [vmem:[%s1 + $0x598] sm:$0xf] %vm650, %v507
  %830 = vst.msk [vmem:[%s1 + $0x5a0] sm:$0xff] %vm648, %v508
  %831 = vst.msk [vmem:[%s1 + $0x5a8] sm:$0xf] %vm650, %v509
  %832 = vst.msk [vmem:[%s1 + $0x5b0] sm:$0xff] %vm648, %v510
  %833 = vst.msk [vmem:[%s1 + $0x5b8] sm:$0xf] %vm650, %v511
  %834 = vst.msk [vmem:[%s1 + $0x5c0] sm:$0xff] %vm648, %v512
  %835 = vst.msk [vmem:[%s1 + $0x5c8] sm:$0xf] %vm650, %v513
  %836 = vst.msk [vmem:[%s1 + $0x5d0] sm:$0xff] %vm648, %v514
  %837 = vst.msk [vmem:[%s1 + $0x5d8] sm:$0xf] %vm650, %v515
  %838 = vst.msk [vmem:[%s1 + $0x5e0] sm:$0xff] %vm648, %v516
  %839 = vst.msk [vmem:[%s1 + $0x5e8] sm:$0xf] %vm650, %v517
  %840 = vst.msk [vmem:[%s1 + $0x5f0] sm:$0xff] %vm648, %v518
  %841 = vst.msk [vmem:[%s1 + $0x5f8] sm:$0xf] %vm650, %v519
  %842 = vst.msk [vmem:[%s1 + $0x600] sm:$0xff] %vm648, %v520
  %843 = vst.msk [vmem:[%s1 + $0x608] sm:$0xf] %vm650, %v521
  %844 = vst.msk [vmem:[%s1 + $0x610] sm:$0xff] %vm648, %v522
  %845 = vst.msk [vmem:[%s1 + $0x618] sm:$0xf] %vm650, %v523
  %846 = vst.msk [vmem:[%s1 + $0x620] sm:$0xff] %vm648, %v524
  %847 = vst.msk [vmem:[%s1 + $0x628] sm:$0xf] %vm650, %v525
  %848 = vst.msk [vmem:[%s1 + $0x630] sm:$0xff] %vm648, %v526
  %849 = vst.msk [vmem:[%s1 + $0x638] sm:$0xf] %vm650, %v527
  %850 = vst.msk [vmem:[%s1 + $0x640] sm:$0xff] %vm648, %v528
  %851 = vst.msk [vmem:[%s1 + $0x648] sm:$0xf] %vm650, %v529
  %852 = vst.msk [vmem:[%s1 + $0x650] sm:$0xff] %vm648, %v530
  %853 = vst.msk [vmem:[%s1 + $0x658] sm:$0xf] %vm650, %v531
  %854 = vst.msk [vmem:[%s1 + $0x660] sm:$0xff] %vm648, %v532
  %855 = vst.msk [vmem:[%s1 + $0x668] sm:$0xf] %vm650, %v533
  %856 = vst.msk [vmem:[%s1 + $0x670] sm:$0xff] %vm648, %v534
  %857 = vst.msk [vmem:[%s1 + $0x678] sm:$0xf] %vm650, %v535
  %858 = vst.msk [vmem:[%s1 + $0x680] sm:$0xff] %vm648, %v536
  %859 = vst.msk [vmem:[%s1 + $0x688] sm:$0xf] %vm650, %v537
  %860 = vst.msk [vmem:[%s1 + $0x690] sm:$0xff] %vm648, %v538
  %861 = vst.msk [vmem:[%s1 + $0x698] sm:$0xf] %vm650, %v539
  %862 = vst.msk [vmem:[%s1 + $0x6a0] sm:$0xff] %vm648, %v540
  %863 = vst.msk [vmem:[%s1 + $0x6a8] sm:$0xf] %vm650, %v541
  %864 = vst.msk [vmem:[%s1 + $0x6b0] sm:$0xff] %vm648, %v542
  %865 = vst.msk [vmem:[%s1 + $0x6b8] sm:$0xf] %vm650, %v543
  %866 = vst.msk [vmem:[%s1 + $0x6c0] sm:$0xff] %vm648, %v544
  %867 = vst.msk [vmem:[%s1 + $0x6c8] sm:$0xf] %vm650, %v545
  %868 = vst.msk [vmem:[%s1 + $0x6d0] sm:$0xff] %vm648, %v546
  %869 = vst.msk [vmem:[%s1 + $0x6d8] sm:$0xf] %vm650, %v547
  %870 = vst.msk [vmem:[%s1 + $0x6e0] sm:$0xff] %vm648, %v548
  %871 = vst.msk [vmem:[%s1 + $0x6e8] sm:$0xf] %vm650, %v549
  %872 = vst.msk [vmem:[%s1 + $0x6f0] sm:$0xff] %vm648, %v550
  %873 = vst.msk [vmem:[%s1 + $0x6f8] sm:$0xf] %vm650, %v551
  %874 = vst.msk [vmem:[%s1 + $0x700] sm:$0xff] %vm648, %v552
  %875 = vst.msk [vmem:[%s1 + $0x708] sm:$0xf] %vm650, %v553
  %876 = vst.msk [vmem:[%s1 + $0x710] sm:$0xff] %vm648, %v554
  %877 = vst.msk [vmem:[%s1 + $0x718] sm:$0xf] %vm650, %v555
  %878 = vst.msk [vmem:[%s1 + $0x720] sm:$0xff] %vm648, %v556
  %879 = vst.msk [vmem:[%s1 + $0x728] sm:$0xf] %vm650, %v557
  %880 = vst.msk [vmem:[%s1 + $0x730] sm:$0xff] %vm648, %v558
  %881 = vst.msk [vmem:[%s1 + $0x738] sm:$0xf] %vm650, %v559
  %882 = vst.msk [vmem:[%s1 + $0x740] sm:$0xff] %vm648, %v560
  %883 = vst.msk [vmem:[%s1 + $0x748] sm:$0xf] %vm650, %v561
  %884 = vst.msk [vmem:[%s1 + $0x750] sm:$0xff] %vm648, %v562
  %885 = vst.msk [vmem:[%s1 + $0x758] sm:$0xf] %vm650, %v563
  %886 = vst.msk [vmem:[%s1 + $0x760] sm:$0xff] %vm648, %v564
  %887 = vst.msk [vmem:[%s1 + $0x768] sm:$0xf] %vm650, %v565
  %888 = vst.msk [vmem:[%s1 + $0x770] sm:$0xff] %vm648, %v566
  %889 = vst.msk [vmem:[%s1 + $0x778] sm:$0xf] %vm650, %v567
  %890 = vst.msk [vmem:[%s1 + $0x780] sm:$0xff] %vm648, %v568
  %891 = vst.msk [vmem:[%s1 + $0x788] sm:$0xf] %vm650, %v569
  %892 = vst.msk [vmem:[%s1 + $0x790] sm:$0xff] %vm648, %v570
  %893 = vst.msk [vmem:[%s1 + $0x798] sm:$0xf] %vm650, %v571
  %894 = vst.msk [vmem:[%s1 + $0x7a0] sm:$0xff] %vm648, %v572
  %895 = vst.msk [vmem:[%s1 + $0x7a8] sm:$0xf] %vm650, %v573
  %896 = vst.msk [vmem:[%s1 + $0x7b0] sm:$0xff] %vm648, %v574
  %897 = vst.msk [vmem:[%s1 + $0x7b8] sm:$0xf] %vm650, %v575
  %898 = vst.msk [vmem:[%s1 + $0x7c0] sm:$0xff] %vm648, %v576
  %899 = vst.msk [vmem:[%s1 + $0x7c8] sm:$0xf] %vm650, %v577
  %900 = vst.msk [vmem:[%s1 + $0x7d0] sm:$0xff] %vm648, %v578
  %901 = vst.msk [vmem:[%s1 + $0x7d8] sm:$0xf] %vm650, %v579
  %902 = vst.msk [vmem:[%s1 + $0x7e0] sm:$0xff] %vm648, %v580
  %903 = vst.msk [vmem:[%s1 + $0x7e8] sm:$0xf] %vm650, %v581
  %904 = vst.msk [vmem:[%s1 + $0x7f0] sm:$0xff] %vm648, %v582
  %905 = vst.msk [vmem:[%s1 + $0x7f8] sm:$0xf] %vm650, %v583
  %906 = vst.msk [vmem:[%s1 + $0x800] sm:$0xff] %vm648, %v584
  %907 = vst.msk [vmem:[%s1 + $0x808] sm:$0xf] %vm650, %v585
  %908 = vst.msk [vmem:[%s1 + $0x810] sm:$0xff] %vm648, %v586
  %909 = vst.msk [vmem:[%s1 + $0x818] sm:$0xf] %vm650, %v587
  %910 = vst.msk [vmem:[%s1 + $0x820] sm:$0xff] %vm648, %v588
  %911 = vst.msk [vmem:[%s1 + $0x828] sm:$0xf] %vm650, %v589
  %912 = vst.msk [vmem:[%s1 + $0x830] sm:$0xff] %vm648, %v590
  %913 = vst.msk [vmem:[%s1 + $0x838] sm:$0xf] %vm650, %v591
  %914 = vst.msk [vmem:[%s1 + $0x840] sm:$0xff] %vm648, %v592
  %915 = vst.msk [vmem:[%s1 + $0x848] sm:$0xf] %vm650, %v593
  %916 = vst.msk [vmem:[%s1 + $0x850] sm:$0xff] %vm648, %v594
  %917 = vst.msk [vmem:[%s1 + $0x858] sm:$0xf] %vm650, %v595
  %918 = vst.msk [vmem:[%s1 + $0x860] sm:$0xff] %vm648, %v596
  %919 = vst.msk [vmem:[%s1 + $0x868] sm:$0xf] %vm650, %v597
  %920 = vst.msk [vmem:[%s1 + $0x870] sm:$0xff] %vm648, %v598
  %921 = vst.msk [vmem:[%s1 + $0x878] sm:$0xf] %vm650, %v599
  %922 = vst.msk [vmem:[%s1 + $0x880] sm:$0xff] %vm648, %v600
  %923 = vst.msk [vmem:[%s1 + $0x888] sm:$0xf] %vm650, %v601
  %924 = vst.msk [vmem:[%s1 + $0x890] sm:$0xff] %vm648, %v602
  %925 = vst.msk [vmem:[%s1 + $0x898] sm:$0xf] %vm650, %v603
  %926 = vst.msk [vmem:[%s1 + $0x8a0] sm:$0xff] %vm648, %v604
  %927 = vst.msk [vmem:[%s1 + $0x8a8] sm:$0xf] %vm650, %v605
  %928 = vst.msk [vmem:[%s1 + $0x8b0] sm:$0xff] %vm648, %v606
  %929 = vst.msk [vmem:[%s1 + $0x8b8] sm:$0xf] %vm650, %v607
  %930 = vst.msk [vmem:[%s1 + $0x8c0] sm:$0xff] %vm648, %v608
  %931 = vst.msk [vmem:[%s1 + $0x8c8] sm:$0xf] %vm650, %v609
  %932 = vst.msk [vmem:[%s1 + $0x8d0] sm:$0xff] %vm648, %v610
  %933 = vst.msk [vmem:[%s1 + $0x8d8] sm:$0xf] %vm650, %v611
  %934 = vst.msk [vmem:[%s1 + $0x8e0] sm:$0xff] %vm648, %v612
  %935 = vst.msk [vmem:[%s1 + $0x8e8] sm:$0xf] %vm650, %v613
  %936 = vst.msk [vmem:[%s1 + $0x8f0] sm:$0xff] %vm648, %v614
  %937 = vst.msk [vmem:[%s1 + $0x8f8] sm:$0xf] %vm650, %v615
  %938 = vst.msk [vmem:[%s1 + $0x900] sm:$0xff] %vm648, %v616
  %939 = vst.msk [vmem:[%s1 + $0x908] sm:$0xf] %vm650, %v617
  %940 = vst.msk [vmem:[%s1 + $0x910] sm:$0xff] %vm648, %v618
  %941 = vst.msk [vmem:[%s1 + $0x918] sm:$0xf] %vm650, %v619
  %942 = vst.msk [vmem:[%s1 + $0x920] sm:$0xff] %vm648, %v620
  %943 = vst.msk [vmem:[%s1 + $0x928] sm:$0xf] %vm650, %v621
  %944 = vst.msk [vmem:[%s1 + $0x930] sm:$0xff] %vm648, %v622
  %945 = vst.msk [vmem:[%s1 + $0x938] sm:$0xf] %vm650, %v623
  %946 = vst.msk [vmem:[%s1 + $0x940] sm:$0xff] %vm648, %v624
  %947 = vst.msk [vmem:[%s1 + $0x948] sm:$0xf] %vm650, %v625
  %948 = vst.msk [vmem:[%s1 + $0x950] sm:$0xff] %vm648, %v626
  %949 = vst.msk [vmem:[%s1 + $0x958] sm:$0xf] %vm650, %v627
  %950 = vst.msk [vmem:[%s1 + $0x960] sm:$0xff] %vm648, %v628
  %951 = vst.msk [vmem:[%s1 + $0x968] sm:$0xf] %vm650, %v629
  %952 = vst.msk [vmem:[%s1 + $0x970] sm:$0xff] %vm648, %v630
  %953 = vst.msk [vmem:[%s1 + $0x978] sm:$0xf] %vm650, %v631
  %954 = vst.msk [vmem:[%s1 + $0x980] sm:$0xff] %vm648, %v632
  %955 = vst.msk [vmem:[%s1 + $0x988] sm:$0xf] %vm650, %v633
  %956 = vst.msk [vmem:[%s1 + $0x990] sm:$0xff] %vm648, %v634
  %957 = vst.msk [vmem:[%s1 + $0x998] sm:$0xf] %vm650, %v635
  %958 = vst.msk [vmem:[%s1 + $0x9a0] sm:$0xff] %vm648, %v636
  %959 = vst.msk [vmem:[%s1 + $0x9a8] sm:$0xf] %vm650, %v637
  %960 = vst.msk [vmem:[%s1 + $0x9b0] sm:$0xff] %vm648, %v638
  %961 = vst.msk [vmem:[%s1 + $0x9b8] sm:$0xf] %vm650, %v639
  %962 = vst.msk [vmem:[%s1 + $0x9c0] sm:$0xff] %vm648, %v640
  %963 = vst.msk [vmem:[%s1 + $0x9c8] sm:$0xf] %vm650, %v641
  %964 = vst.msk [vmem:[%s1 + $0x9d0] sm:$0xff] %vm648, %v642
  %965 = vst.msk [vmem:[%s1 + $0x9d8] sm:$0xf] %vm650, %v643
  %966 = vst.msk [vmem:[%s1 + $0x9e0] sm:$0xff] %vm648, %v644
  %967 = vst.msk [vmem:[%s1 + $0x9e8] sm:$0xf] %vm650, %v645
  %968 = vst.msk [vmem:[%s1 + $0x9f0] sm:$0xff] %vm648, %v646
  %969 = vst.msk [vmem:[%s1 + $0x9f8] sm:$0xf] %vm650, %v647
  // Predicated region
  $region6: #{tpu_custom_call.1} parent=0 // pred_check
    _
  $region7: #{tpu_custom_call.1} parent=0 // pred_check_branch
    %971 = sbr.rel (0) target = $region9
  $region8: #{tpu_custom_call.1} parent=0 // pred_region
    _
  $region9: #{tpu_custom_call.1} parent=0 // pred_fallthru
    _
  // Predicated region
  $region10: #{tpu_custom_call.1} parent=0 // pred_check
    _
  $region11: #{tpu_custom_call.1} parent=0 // pred_check_branch
    %973 = sbr.rel (0) target = $region13
  $region12: #{tpu_custom_call.1} parent=0 // pred_region
    _
  $region13: #{tpu_custom_call.1} parent=0 // pred_fallthru
    _

</llo_original>
